<compile_context>
chip_gen: v7x
topology: tpu7x:2x2x1
jax: 0.10.0
libtpu: 0.0.40
codegen_flags: <defaults>
</compile_context>

<pallas_src>
import functools
import math
from collections import OrderedDict

import jax
import jax.numpy as jnp
from jax.experimental import pallas as pl
from jax.experimental.pallas import tpu as pltpu

FEAT_DIM = 1024

# Synthetic architecture (would normally come from arch_file JSON).
ARCH = OrderedDict([
    ("layer1", [{"name": "fc1", "type": "F", "in_ch": 4, "out_ch": 8}]),
    ("layer2", [{"name": "fc2", "type": "F", "in_ch": 8, "out_ch": 4}]),
])


def _pick_tile(n, target=512):
    """Largest divisor of n that is a multiple of 16 (then 8) and <= target;
    falls back to n (a single full tile)."""
    if n <= target:
        return n
    for step in (16, 8):
        for t in range(target - target % step, 0, -step):
            if n % t == 0:
                return t
    # TODO(synk): pad/mask ragged N instead of falling back to a full-N block.
    return n


def _single_buffered_spec(block_shape, index_map):
    """BlockSpec with a 1-deep pipeline buffer (index depends only on the batch
    axis, so a second buffer buys nothing and doubles the largest VMEM alloc).
    Falls back to a plain BlockSpec if pipeline_mode isn't available."""
    try:
        return pl.BlockSpec(block_shape, index_map,
                            pipeline_mode=pl.Buffered(1))
    except Exception:  # noqa: BLE001 - older JAX without pipeline_mode
        return pl.BlockSpec(block_shape, index_map)


# ----------------------------------------------------------------------------
# Kernel 1: pointwise MLP (conv1/bn1/relu -> conv2/bn2/relu -> conv3/bn3)
# BatchNorm (eval mode) folded into the weights/shifts in the JAX wrapper.
# ----------------------------------------------------------------------------
def _feat_mlp_kernel(x_ref, w1_ref, c1_ref, w2_ref, c2_ref, w3_ref, c3_ref,
                     o_ref, *, cin):
    x = x_ref[0]                                       # (TM, Cin) f32
    w1 = w1_ref[...]                                   # (Cin, 64) f32

    # Layer 1 on the VPU: K = cin (e.g. 3) is far too small for the MXU
    # (systolic fill dominates); unrolled broadcast mul-add instead.
    h = x[:, 0:1] * w1[0:1, :] + c1_ref[...]           # (TM, 64)
    for c in range(1, cin):
        h = h + x[:, c:c + 1] * w1[c:c + 1, :]
    h = jnp.maximum(h, 0.0)

    # Layers 2/3 on the MXU: bf16 inputs, f32 accumulation, f32 bias/relu.
    h = jnp.maximum(
        jnp.dot(h.astype(jnp.bfloat16), w2_ref[...],
                preferred_element_type=jnp.float32) + c2_ref[...], 0.0)
    f = jnp.dot(h.astype(jnp.bfloat16), w3_ref[...],
                preferred_element_type=jnp.float32) + c3_ref[...]
    # bf16 store: halves the dominant HBM write of this (store-bound) kernel
    # and halves kernel 2's whole-batch read / VMEM residency.
    o_ref[0] = f.astype(o_ref.dtype)                   # (TM, 1024) bf16


def feat_mlp(x, w1, c1, w2, c2, w3, c3, *, tile=512):
    B, N, Cin = x.shape
    C = w3.shape[1]
    tm = _pick_tile(N, tile)
    grid = (B, N // tm)
    kernel = functools.partial(_feat_mlp_kernel, cin=Cin)
    return pl.pallas_call(
        kernel,
        out_shape=jax.ShapeDtypeStruct((B, N, C), jnp.bfloat16),
        grid=grid,
        in_specs=[
            pl.BlockSpec((1, tm, Cin), lambda b, m: (b, m, 0)),
            pl.BlockSpec(w1.shape, lambda b, m: (0, 0)),
            pl.BlockSpec(c1.shape, lambda b, m: (0, 0)),
            pl.BlockSpec(w2.shape, lambda b, m: (0, 0)),
            pl.BlockSpec(c2.shape, lambda b, m: (0, 0)),
            pl.BlockSpec(w3.shape, lambda b, m: (0, 0)),
            pl.BlockSpec(c3.shape, lambda b, m: (0, 0)),
        ],
        out_specs=pl.BlockSpec((1, tm, C), lambda b, m: (b, m, 0)),
        compiler_params=pltpu.CompilerParams(
            dimension_semantics=("parallel", "parallel")),
    )(x, w1, c1, w2, c2, w3, c3)


# ----------------------------------------------------------------------------
# Kernel 2: neighborhood gather + max, fused with the (concatenated) regressor
# heads.  adj convention (as in the PyTorch code): index 0 -> padded zero row,
# index j >= 1 -> point j-1.  Self feature is always included in the max.
# ----------------------------------------------------------------------------
def _neigh_head_kernel(f_ref, adj_ref, w_ref, b_ref, y_ref, o_ref, *, tm, k):
    m = pl.program_id(1)
    row0 = m * tm                                      # first point of the tile

    @pl.loop(0, tm)
    def _(r):
        self_row = row0 + r
        # Self row, widened once to f32 (keeps compare/select f32 on v5e).
        acc = f_ref[0, pl.ds(self_row, 1), :].astype(jnp.float32)   # (1, C)
        pad_cnt = jnp.int32(0)
        for kk in range(k):                            # static unroll of K
            idx = adj_ref[0, 0, r * k + kk]            # SMEM scalar
            pad_cnt = pad_cnt + (idx == 0).astype(jnp.int32)
            # Padded neighbor -> gather the self row instead (a no-op for the
            # max); the zero-row contribution is applied once after the loop.
            # Scalar select on the index replaces a per-neighbor vector select.
            gidx = jnp.where(idx == 0, self_row, idx - 1)
            nb = f_ref[0, pl.ds(gidx, 1), :].astype(jnp.float32)     # (1, C)
            acc = jnp.maximum(acc, nb)
        # One clamp per row replaces K per-neighbor vselects: padded neighbors
        # contribute exactly a zero row to the max.
        pad_floor = jnp.where(pad_cnt > 0, 0.0, -jnp.inf)
        acc = jnp.maximum(acc, pad_floor)
        # Write the finished row straight into the bf16 output block (no f32
        # scratch, no whole-tile recast/re-store).  Lossless: acc is either a
        # widened bf16 value or exactly 0.0.
        y_ref[0, pl.ds(r, 1), :] = acc.astype(y_ref.dtype)

    y_tile = y_ref[0]                                  # (TM, C) bf16, MXU-ready
    # Fused regressor heads: single lane-dense matmul for ALL modules.
    o_ref[0] = (jnp.dot(y_tile, w_ref[...],
                        preferred_element_type=jnp.float32) + b_ref[...])


def neighbor_max_heads(adj, f, head_w, head_b, *, tile=512):
    B, N, C = f.shape
    K = adj.shape[2]
    D = head_w.shape[1]
    tm = _pick_tile(N, tile)
    grid = (B, N // tm)
    # Per-tile adjacency block: bounds SMEM use to tm*K ints per step (the
    # previous whole-table scalar prefetch padded to the next power of two and
    # would not fit SMEM at realistic B*N*K).
    adj_r = adj.reshape(B, N // tm, tm * K).astype(jnp.int32)

    # Explicit scoped-VMEM budget: resident feature block + head weights +
    # output tiles (+ headroom); the default 16/32 MiB limit is hit long
    # before physical VMEM once N grows.
    f_bytes = N * C * 2
    y_bytes = tm * C * 2
    o_bytes = tm * D * 4
    w_bytes = C * D * 2 + D * 4
    vmem_budget = 2 * (f_bytes + y_bytes + o_bytes + w_bytes) + (4 << 20)
    vmem_budget = max(16 << 20, min(vmem_budget, 100 << 20))

    kernel = functools.partial(_neigh_head_kernel, tm=tm, k=K)
    y, out = pl.pallas_call(
        kernel,
        out_shape=(jax.ShapeDtypeStruct((B, N, C), jnp.bfloat16),
                   jax.ShapeDtypeStruct((B, N, D), jnp.float32)),
        grid=grid,
        in_specs=[
            # Whole-batch feature block, bf16, single pipeline buffer (its
            # index depends only on b).
            _single_buffered_spec((1, N, C), lambda b, m: (b, 0, 0)),
            pl.BlockSpec((1, 1, tm * K), lambda b, m: (b, m, 0),
                         memory_space=pltpu.MemorySpace.SMEM),
            pl.BlockSpec(head_w.shape, lambda b, m: (0, 0)),
            pl.BlockSpec(head_b.shape, lambda b, m: (0, 0)),
        ],
        out_specs=[
            pl.BlockSpec((1, tm, C), lambda b, m: (b, m, 0)),
            pl.BlockSpec((1, tm, D), lambda b, m: (b, m, 0)),
        ],
        compiler_params=pltpu.CompilerParams(
            # Batch axis parallel, points axis arbitrary: on a 2-TC part the
            # cores split over b and don't both DMA the same (N,1024) block.
            dimension_semantics=("parallel", "arbitrary"),
            vmem_limit_bytes=vmem_budget),
    )(f, adj_r, head_w, head_b)
    return y, out


# ----------------------------------------------------------------------------
# Parameter construction (deterministic).  BatchNorm is eval-mode and folded.
# ----------------------------------------------------------------------------
def _conv_bn_fold(key, cin, cout, *, mxu=True, eps=1e-5):
    kw, kb, kg, kbe, km, kv = jax.random.split(key, 6)
    W = jax.random.normal(kw, (cin, cout), jnp.float32) / math.sqrt(cin)
    b = 0.1 * jax.random.normal(kb, (cout,), jnp.float32)
    gamma = 1.0 + 0.1 * jax.random.normal(kg, (cout,), jnp.float32)
    beta = 0.05 * jax.random.normal(kbe, (cout,), jnp.float32)
    mean = 0.1 * jax.random.normal(km, (cout,), jnp.float32)
    var = 1.0 + 0.1 * jax.random.uniform(kv, (cout,), jnp.float32)
    s = gamma / jnp.sqrt(var + eps)
    W_folded = W * s[None, :]
    c_folded = ((b - mean) * s + beta)[None, :]
    if mxu:
        W_folded = W_folded.astype(jnp.bfloat16)           # MXU input dtype
    return W_folded, c_folded


def _build_fused_head(key, arch, feat_dim=FEAT_DIM, lane=128):
    """Concatenate every module's weight/bias Linear into one matmul, padded
    to a multiple of 128 output lanes.  Returns (W, b, layout)."""
    cols_w, cols_b = [], []
    layout = OrderedDict()
    off = 0
    rk = key
    for layer_name, layer_arch in arch.items():
        layout[layer_name] = []
        for module_arch in layer_arch:
            if module_arch["type"] != "F":
                continue
            in_ch = int(module_arch["in_ch"])
            out_ch = int(module_arch["out_ch"])
            rk, kw1, kb1, kw2, kb2 = jax.random.split(rk, 5)
            Ww = 0.02 * jax.random.normal(kw1, (feat_dim, out_ch * in_ch), jnp.float32)
            bw = 0.02 * jax.random.normal(kb1, (out_ch * in_ch,), jnp.float32)
            Wb = 0.02 * jax.random.normal(kw2, (feat_dim, out_ch), jnp.float32)
            bb = 0.02 * jax.random.normal(kb2, (out_ch,), jnp.float32)
            cols_w += [Ww, Wb]
            cols_b += [bw, bb]
            layout[layer_name].append(
                (in_ch, out_ch, off, off + out_ch * in_ch,
                 off + out_ch * in_ch + out_ch))
            off += out_ch * in_ch + out_ch
    d = off
    d_pad = max(lane, ((d + lane - 1) // lane) * lane)
    W = jnp.concatenate(cols_w, axis=1)
    bvec = jnp.concatenate(cols_b)
    if d_pad > d:
        W = jnp.pad(W, ((0, 0), (0, d_pad - d)))
        bvec = jnp.pad(bvec, (0, d_pad - d))
    return W.astype(jnp.bfloat16), bvec[None, :].astype(jnp.float32), layout


def init_params(key, in_channels=3, arch=ARCH):
    k1, k2, k3, k4 = jax.random.split(key, 4)
    w1, c1 = _conv_bn_fold(k1, in_channels, 64, mxu=False)   # VPU layer: f32
    w2, c2 = _conv_bn_fold(k2, 64, 128)                      # bf16 MXU weights
    w3, c3 = _conv_bn_fold(k3, 128, FEAT_DIM)
    head_w, head_b, layout = _build_fused_head(k4, arch)
    return {"mlp": (w1, c1, w2, c2, w3, c3),
            "head_w": head_w, "head_b": head_b, "head_layout": layout}


# ----------------------------------------------------------------------------
# OuterNet.forward
# ----------------------------------------------------------------------------
def outer_net_forward(params, x, adj, return_feat=False, tile=512):
    B, N, _ = x.shape
    f = feat_mlp(x, *params["mlp"], tile=tile)              # (B,N,1024) bf16
    y, head_out = neighbor_max_heads(adj, f,
                                     params["head_w"], params["head_b"],
                                     tile=tile)
    pred_weight = OrderedDict()
    for layer_name, mods in params["head_layout"].items():
        pred_weight[layer_name] = []
        for (in_ch, out_ch, w0, b0, b1) in mods:
            pw = head_out[..., w0:b0].reshape(B, N, out_ch, in_ch)
            pb = head_out[..., b0:b1]
            pred_weight[layer_name].append({"weight": pw, "bias": pb})
    if return_feat:
        # y is bf16 but lossless w.r.t. the bf16-stored feature (the max picks
        # one of those exact values, or exactly 0 for padded neighborhoods).
        return pred_weight, y.astype(jnp.float32)
    return pred_weight


# ----------------------------------------------------------------------------
# Pure-JAX reference (for correctness checking only; mirrors the bf16 MXU /
# inter-kernel boundaries so tolerances stay tight).
# ----------------------------------------------------------------------------
def reference_forward(params, x, adj):
    w1, c1, w2, c2, w3, c3 = params["mlp"]
    h = jax.nn.relu(x @ w1 + c1)
    h = jax.nn.relu(jnp.dot(h.astype(jnp.bfloat16), w2,
                            preferred_element_type=jnp.float32) + c2)
    f = jnp.dot(h.astype(jnp.bfloat16), w3,
                preferred_element_type=jnp.float32) + c3
    f = f.astype(jnp.bfloat16).astype(jnp.float32)          # bf16 feature store
    B, N, C = f.shape
    fz = jnp.concatenate([jnp.zeros((B, 1, C), f.dtype), f], axis=1)
    patches = jax.vmap(lambda fb, ab: fb[ab])(fz, adj)      # (B,N,K,C)
    patches = jnp.concatenate([patches, f[:, :, None, :]], axis=2)
    y = patches.max(axis=2)
    out = jnp.dot(y.astype(jnp.bfloat16), params["head_w"],
                  preferred_element_type=jnp.float32) + params["head_b"]
    pred_weight = OrderedDict()
    for layer_name, mods in params["head_layout"].items():
        pred_weight[layer_name] = []
        for (in_ch, out_ch, w0, b0, b1) in mods:
            pred_weight[layer_name].append({
                "weight": out[..., w0:b0].reshape(B, N, out_ch, in_ch),
                "bias": out[..., b0:b1]})
    return pred_weight, y


if __name__ == "__main__":
    # Small shapes, but with N > tile so the multi-tile grid path, cross-tile
    # gather indexing and per-tile SMEM adjacency are all exercised.
    B, N, K, CIN = 2, 32, 4, 3
    TILE = 16
    key = jax.random.PRNGKey(0)
    kx, kadj, kp = jax.random.split(key, 3)

    x = jax.random.normal(kx, (B, N, CIN), jnp.float32)
    # adj entries in [0, N]; 0 means "zero padding row", j>=1 means point j-1.
    adj = jax.random.randint(kadj, (B, N, K), 0, N + 1, dtype=jnp.int32)

    params = init_params(kp, in_channels=CIN, arch=ARCH)

    pred_weight, feat = outer_net_forward(params, x, adj,
                                          return_feat=True, tile=TILE)
    feat = jax.block_until_ready(feat)
    pred_weight = jax.block_until_ready(pred_weight)

    ref_pred, ref_feat = reference_forward(params, x, adj)

    # bf16 is used at MXU boundaries and for the stored feature, so compare at
    # bf16-level tolerances (the neighbor max itself is exact).
    assert jnp.allclose(feat, ref_feat, rtol=2e-2, atol=2e-2), "feature mismatch"
    for layer_name in ARCH:
        for got, ref in zip(pred_weight[layer_name], ref_pred[layer_name]):
            assert jnp.allclose(got["weight"], ref["weight"], rtol=2e-2, atol=2e-2)
            assert jnp.allclose(got["bias"], ref["bias"], rtol=2e-2, atol=2e-2)

    print("KERNEL_OK")
</pallas_src>

<mosaic_0001>
module attributes {stable_mosaic.version = 11 : i64} {
  func.func @_feat_mlp_kernel(%arg0: i32, %arg1: i32, %arg2: memref<1x16x3xf32, #tpu.memory_space<vmem>>, %arg3: memref<3x64xf32, #tpu.memory_space<vmem>>, %arg4: memref<1x64xf32, #tpu.memory_space<vmem>>, %arg5: memref<64x128xbf16, #tpu.memory_space<vmem>>, %arg6: memref<1x128xf32, #tpu.memory_space<vmem>>, %arg7: memref<128x1024xbf16, #tpu.memory_space<vmem>>, %arg8: memref<1x1024xf32, #tpu.memory_space<vmem>>, %arg9: memref<1x16x1024xbf16, #tpu.memory_space<vmem>>) attributes {dimension_semantics = [#tpu.dimension_semantics<parallel>, #tpu.dimension_semantics<parallel>], iteration_bounds = array<i64: 2, 2>, scalar_prefetch = 0 : i64, scratch_operands = 0 : i64, tpu.core_type = #tpu.core_type<tc>, window_params = [{transform_indices = @transform_0, window_bounds = array<i64: 1, 16, 3>}, {pipeline_mode = #tpu.pipeline_mode<synchronous>, transform_indices = @transform_1, window_bounds = array<i64: 3, 64>}, {pipeline_mode = #tpu.pipeline_mode<synchronous>, transform_indices = @transform_2, window_bounds = array<i64: 1, 64>}, {pipeline_mode = #tpu.pipeline_mode<synchronous>, transform_indices = @transform_3, window_bounds = array<i64: 64, 128>}, {pipeline_mode = #tpu.pipeline_mode<synchronous>, transform_indices = @transform_4, window_bounds = array<i64: 1, 128>}, {pipeline_mode = #tpu.pipeline_mode<synchronous>, transform_indices = @transform_5, window_bounds = array<i64: 128, 1024>}, {pipeline_mode = #tpu.pipeline_mode<synchronous>, transform_indices = @transform_6, window_bounds = array<i64: 1, 1024>}, {transform_indices = @transform_7, window_bounds = array<i64: 1, 16, 1024>}]} {
    %c0 = arith.constant 0 : index
    %c0_0 = arith.constant 0 : index
    %c0_1 = arith.constant 0 : index
    %0 = vector.load %arg2[%c0, %c0_0, %c0_1] : memref<1x16x3xf32, #tpu.memory_space<vmem>>, vector<1x16x3xf32>
    %1 = vector.shape_cast %0 : vector<1x16x3xf32> to vector<16x3xf32>
    %c0_2 = arith.constant 0 : index
    %c0_3 = arith.constant 0 : index
    %2 = vector.load %arg3[%c0_2, %c0_3] : memref<3x64xf32, #tpu.memory_space<vmem>>, vector<3x64xf32>
    %3 = vector.extract_strided_slice %1 {offsets = [0, 0], sizes = [16, 1], strides = [1, 1]} : vector<16x3xf32> to vector<16x1xf32>
    %4 = vector.extract_strided_slice %2 {offsets = [0, 0], sizes = [1, 64], strides = [1, 1]} : vector<3x64xf32> to vector<1x64xf32>
    %5 = vector.broadcast %3 : vector<16x1xf32> to vector<16x64xf32>
    %6 = vector.broadcast %4 : vector<1x64xf32> to vector<16x64xf32>
    %7 = arith.mulf %5, %6 : vector<16x64xf32>
    %c0_4 = arith.constant 0 : index
    %c0_5 = arith.constant 0 : index
    %8 = vector.load %arg4[%c0_4, %c0_5] : memref<1x64xf32, #tpu.memory_space<vmem>>, vector<1x64xf32>
    %9 = vector.broadcast %8 : vector<1x64xf32> to vector<16x64xf32>
    %10 = arith.addf %7, %9 : vector<16x64xf32>
    %11 = vector.extract_strided_slice %1 {offsets = [0, 1], sizes = [16, 1], strides = [1, 1]} : vector<16x3xf32> to vector<16x1xf32>
    %12 = vector.extract_strided_slice %2 {offsets = [1, 0], sizes = [1, 64], strides = [1, 1]} : vector<3x64xf32> to vector<1x64xf32>
    %13 = vector.broadcast %11 : vector<16x1xf32> to vector<16x64xf32>
    %14 = vector.broadcast %12 : vector<1x64xf32> to vector<16x64xf32>
    %15 = arith.mulf %13, %14 : vector<16x64xf32>
    %16 = arith.addf %10, %15 : vector<16x64xf32>
    %17 = vector.extract_strided_slice %1 {offsets = [0, 2], sizes = [16, 1], strides = [1, 1]} : vector<16x3xf32> to vector<16x1xf32>
    %18 = vector.extract_strided_slice %2 {offsets = [2, 0], sizes = [1, 64], strides = [1, 1]} : vector<3x64xf32> to vector<1x64xf32>
    %19 = vector.broadcast %17 : vector<16x1xf32> to vector<16x64xf32>
    %20 = vector.broadcast %18 : vector<1x64xf32> to vector<16x64xf32>
    %21 = arith.mulf %19, %20 : vector<16x64xf32>
    %22 = arith.addf %16, %21 : vector<16x64xf32>
    %cst = arith.constant 0.000000e+00 : f32
    %23 = vector.broadcast %cst : f32 to vector<16x64xf32>
    %24 = arith.maximumf %22, %23 : vector<16x64xf32>
    %25 = arith.truncf %24 : vector<16x64xf32> to vector<16x64xbf16>
    %c0_6 = arith.constant 0 : index
    %c0_7 = arith.constant 0 : index
    %26 = vector.load %arg5[%c0_6, %c0_7] : memref<64x128xbf16, #tpu.memory_space<vmem>>, vector<64x128xbf16>
    %cst_8 = arith.constant dense<0.000000e+00> : vector<16x128xf32>
    %27 = tpu.matmul %25, %26, %cst_8 {dimension_numbers = #tpu.dot_dimension_numbers<[1], [0], [0], [1], [0, 0, 1, 1], [], []>} : vector<16x64xbf16>, vector<64x128xbf16>, vector<16x128xf32> -> vector<16x128xf32>
    %c0_9 = arith.constant 0 : index
    %c0_10 = arith.constant 0 : index
    %28 = vector.load %arg6[%c0_9, %c0_10] : memref<1x128xf32, #tpu.memory_space<vmem>>, vector<1x128xf32>
    %29 = vector.broadcast %28 : vector<1x128xf32> to vector<16x128xf32>
    %30 = arith.addf %27, %29 : vector<16x128xf32>
    %cst_11 = arith.constant 0.000000e+00 : f32
    %31 = vector.broadcast %cst_11 : f32 to vector<16x128xf32>
    %32 = arith.maximumf %30, %31 : vector<16x128xf32>
    %33 = arith.truncf %32 : vector<16x128xf32> to vector<16x128xbf16>
    %c0_12 = arith.constant 0 : index
    %c0_13 = arith.constant 0 : index
    %34 = vector.load %arg7[%c0_12, %c0_13] : memref<128x1024xbf16, #tpu.memory_space<vmem>>, vector<128x1024xbf16>
    %cst_14 = arith.constant dense<0.000000e+00> : vector<16x1024xf32>
    %35 = tpu.matmul %33, %34, %cst_14 {dimension_numbers = #tpu.dot_dimension_numbers<[1], [0], [0], [1], [0, 0, 1, 1], [], []>} : vector<16x128xbf16>, vector<128x1024xbf16>, vector<16x1024xf32> -> vector<16x1024xf32>
    %c0_15 = arith.constant 0 : index
    %c0_16 = arith.constant 0 : index
    %36 = vector.load %arg8[%c0_15, %c0_16] : memref<1x1024xf32, #tpu.memory_space<vmem>>, vector<1x1024xf32>
    %37 = vector.broadcast %36 : vector<1x1024xf32> to vector<16x1024xf32>
    %38 = arith.addf %35, %37 : vector<16x1024xf32>
    %39 = arith.truncf %38 : vector<16x1024xf32> to vector<16x1024xbf16>
    %c0_17 = arith.constant 0 : index
    %c0_18 = arith.constant 0 : index
    %c0_19 = arith.constant 0 : index
    %40 = vector.load %arg9[%c0_17, %c0_18, %c0_19] : memref<1x16x1024xbf16, #tpu.memory_space<vmem>>, vector<1x16x1024xbf16>
    %41 = vector.shape_cast %40 : vector<1x16x1024xbf16> to vector<16x1024xbf16>
    %42 = vector.shape_cast %39 : vector<16x1024xbf16> to vector<1x16x1024xbf16>
    tpu.vector_store %arg9[%c0_17, %c0_18, %c0_19], %42 {strides = array<i32>} : memref<1x16x1024xbf16, #tpu.memory_space<vmem>>, vector<1x16x1024xbf16>,
    return
  }
  func.func @transform_0(%arg0: i32, %arg1: i32) -> (i32, i32, i32) {
    %c0_i32 = arith.constant 0 : i32
    %c0_i32_0 = arith.constant 0 : i32
    return %arg0, %arg1, %c0_i32 : i32, i32, i32
  }
  func.func @transform_1(%arg0: i32, %arg1: i32) -> (i32, i32) {
    %c0_i32 = arith.constant 0 : i32
    %c0_i32_0 = arith.constant 0 : i32
    %c0_i32_1 = arith.constant 0 : i32
    return %c0_i32, %c0_i32_0 : i32, i32
  }
  func.func @transform_2(%arg0: i32, %arg1: i32) -> (i32, i32) {
    %c0_i32 = arith.constant 0 : i32
    %c0_i32_0 = arith.constant 0 : i32
    %c0_i32_1 = arith.constant 0 : i32
    return %c0_i32, %c0_i32_0 : i32, i32
  }
  func.func @transform_3(%arg0: i32, %arg1: i32) -> (i32, i32) {
    %c0_i32 = arith.constant 0 : i32
    %c0_i32_0 = arith.constant 0 : i32
    %c0_i32_1 = arith.constant 0 : i32
    return %c0_i32, %c0_i32_0 : i32, i32
  }
  func.func @transform_4(%arg0: i32, %arg1: i32) -> (i32, i32) {
    %c0_i32 = arith.constant 0 : i32
    %c0_i32_0 = arith.constant 0 : i32
    %c0_i32_1 = arith.constant 0 : i32
    return %c0_i32, %c0_i32_0 : i32, i32
  }
  func.func @transform_5(%arg0: i32, %arg1: i32) -> (i32, i32) {
    %c0_i32 = arith.constant 0 : i32
    %c0_i32_0 = arith.constant 0 : i32
    %c0_i32_1 = arith.constant 0 : i32
    return %c0_i32, %c0_i32_0 : i32, i32
  }
  func.func @transform_6(%arg0: i32, %arg1: i32) -> (i32, i32) {
    %c0_i32 = arith.constant 0 : i32
    %c0_i32_0 = arith.constant 0 : i32
    %c0_i32_1 = arith.constant 0 : i32
    return %c0_i32, %c0_i32_0 : i32, i32
  }
  func.func @transform_7(%arg0: i32, %arg1: i32) -> (i32, i32, i32) {
    %c0_i32 = arith.constant 0 : i32
    %c0_i32_0 = arith.constant 0 : i32
    return %arg0, %arg1, %c0_i32 : i32, i32, i32
  }
}

</mosaic_0001>

<llo_original>
// kernel: tpu_custom_call.1
$region0: #{tpu_custom_call.1}
  #allocation0 [shape = 'u32[]', space=smem, size = 0x4, offset = 0x4, fixed_abs, tag = 'smem constant byte address 0x4 - core index']
  #allocation1 [shape = 'u32[144,128]{1,0:T(1,128)}', space=vmem, size = 0x12000, scoped, tag = 'internal scratch']
  %s0 = inlined_call_operand.vmem [shape: f32[2,32,3], index: 0, kind: input, shape index: {}]
  %s1 = inlined_call_operand.vmem [shape: f32[3,64], index: 1, kind: input, shape index: {}]
  %s2 = inlined_call_operand.vmem [shape: f32[1,64], index: 2, kind: input, shape index: {}]
  %s3 = inlined_call_operand.vmem [shape: bf16[64,128], index: 3, kind: input, shape index: {}]
  %s4 = inlined_call_operand.vmem [shape: f32[1,128], index: 4, kind: input, shape index: {}]
  %s5 = inlined_call_operand.hbm [shape: bf16[128,1024], index: 5, kind: input, shape index: {}]
  %s6 = inlined_call_operand.vmem [shape: f32[1,1024], index: 6, kind: input, shape index: {}]
  %s7 = inlined_call_operand.hbm [shape: bf16[2,32,1024], index: 7, kind: output, shape index: {}]
  %s8 = sld [smem:[#allocation0]]
  $region65: #{tpu_custom_call.1} parent=0
    _
  %s10 = ssub.s32 1, %s8
  %s11 = scalar_select 0, %s10, %s8
  $region1: #{tpu_custom_call.1} parent=0
    #allocation2 [shape = 'u8[262144]{0}', space=vmem, size = 0x40000, scoped, tag = 'input window, operand 5, single buffered']
    #allocation3 [shape = 's32[2]{0}', space=sflag, size = 0x8, scoped, tag = 'scoped memory for tpu_custom_call.1']
    #allocation4 [shape = 's32[2]{0}', space=sflag, size = 0x8, scoped, tag = 'scoped memory for tpu_custom_call.1']
    #allocation5 [shape = 'u8[65536]{0}', space=vmem, size = 0x10000, scoped, tag = 'output window, operand 0']
    %12 = vsyncpa [#allocation3], 0
    %13 = vsyncpa [#allocation4], 0
    %s14 = scalar_lea.sflag [#allocation4], 1
    %15 = vsyncpa %s14, 0
    loop: start=0, step=1, limit=6
    $region2: #{tpu_custom_call.1} parent=1 // loop_pre_header
      _
    $region3: #{tpu_custom_call.1} parent=1 // loop_header
      %s17 = sphi 0, %s21
      %p18 = scmp.ge.s32.totalorder %s17, 6
      %s24 = sphi 0, %s36
      %s25 = sphi 0, %s32
      %s26 = sphi 0, %s24
      %s27 = sphi 0, %s25
      %s28 = sphi 0, %s26
      %s29 = sphi 0, %s27
      %s41 = sphi 0, %s43
      %s44 = sphi 0, %s41
      %s45 = sphi 0, %s44
      %s61 = sphi 0, %s45
      %s65 = sphi 0, %s65
      %s67 = sphi 0, %s65
      %s68 = sphi 0, %s67
      %s82 = sphi 0, %s68
      %s86 = sphi 0, %s86
      %s88 = sphi 0, %s86
      %s89 = sphi 0, %s88
      %s103 = sphi 0, %s89
      %s107 = sphi 0, %s107
      %s109 = sphi 0, %s107
      %s110 = sphi 0, %s109
      %s124 = sphi 0, %s110
      %s128 = sphi 0, %s128
      %s130 = sphi 0, %s128
      %s131 = sphi 0, %s130
      %s145 = sphi 0, %s131
      %s149 = sphi 0, %s149
      %s151 = sphi 0, %s149
      %s152 = sphi 0, %s151
      %s166 = sphi 0, %s152
      %s170 = sphi 0, %s170
      %s172 = sphi 0, %s170
      %s173 = sphi 0, %s172
      %s187 = sphi 0, %s173
      %s195 = sphi 0, %s197
      %s198 = sphi 0, %s195
      %s199 = sphi 0, %s198
      %s215 = sphi 0, %s199
    $region4: #{tpu_custom_call.1} parent=1 // loop_header_branch
      %20 = sbr.rel (%p18) target = $region8
    $region5: #{tpu_custom_call.1} parent=1 // loop_body
      %s22 = ssub.s32 %s17, 1
      %s23 = ssub.s32 %s17, 2
      %s30 = sadd.s32 1, %s25
      %p31 = scmp.ge.s32.totalorder %s30, 2
      %s32 = scalar_select %p31, 0, %s30
      %s33 = sadd.s32 1, %s24
      %s34 = scalar_select %p31, %s33, %s24
      %p35 = scmp.ge.s32.totalorder %s34, 2
      %s36 = scalar_select %p35, 0, %s34
      %s37 = ssub.s32 %s24, %s36
      %s38 = ssub.s32 %s25, %s32
      %s39 = sor.u32 %s37, %s38
      %p40 = scmp.eq.s32.totalorder %s39, 0
      %s42 = sadd.s32 %s41, 1
      %s43 = scalar_select %p40, %s41, %s42
      %p46 = pneg %p40
      %p47 = scmp.eq.s32.totalorder %s17, 3
      %p48 = por %p46, %p47
      %p49 = scmp.ne.s32.totalorder %s41, %s44
      %p50 = scmp.eq.s32.totalorder %s17, 0
      %p51 = por %p49, %p50
      %p52 = scmp.ne.s32.totalorder %s41, %s44
      %p53 = scmp.eq.s32.totalorder %s22, 3
      %p54 = por %p52, %p53
      %p55 = scmp.ne.s32.totalorder %s44, %s45
      %p56 = scmp.eq.s32.totalorder %s22, 0
      %p57 = por %p55, %p56
      %p58 = scmp.ne.s32.totalorder %s44, %s45
      %p59 = scmp.eq.s32.totalorder %s23, 3
      %p60 = por %p58, %p59
      %p62 = scmp.ne.s32.totalorder %s45, %s61
      %p63 = scmp.eq.s32.totalorder %s23, 0
      %p64 = por %p62, %p63
      %s66 = sadd.s32 %s65, 1
      %p69 = scmp.eq.s32.totalorder %s17, 3
      %p70 = scmp.ne.s32.totalorder %s65, %s67
      %p71 = scmp.eq.s32.totalorder %s17, 0
      %p72 = por %p70, %p71
      %p73 = scmp.ne.s32.totalorder %s65, %s67
      %p74 = scmp.eq.s32.totalorder %s22, 3
      %p75 = por %p73, %p74
      %p76 = scmp.ne.s32.totalorder %s67, %s68
      %p77 = scmp.eq.s32.totalorder %s22, 0
      %p78 = por %p76, %p77
      %p79 = scmp.ne.s32.totalorder %s67, %s68
      %p80 = scmp.eq.s32.totalorder %s23, 3
      %p81 = por %p79, %p80
      %p83 = scmp.ne.s32.totalorder %s68, %s82
      %p84 = scmp.eq.s32.totalorder %s23, 0
      %p85 = por %p83, %p84
      %s87 = sadd.s32 %s86, 1
      %p90 = scmp.eq.s32.totalorder %s17, 3
      %p91 = scmp.ne.s32.totalorder %s86, %s88
      %p92 = scmp.eq.s32.totalorder %s17, 0
      %p93 = por %p91, %p92
      %p94 = scmp.ne.s32.totalorder %s86, %s88
      %p95 = scmp.eq.s32.totalorder %s22, 3
      %p96 = por %p94, %p95
      %p97 = scmp.ne.s32.totalorder %s88, %s89
      %p98 = scmp.eq.s32.totalorder %s22, 0
      %p99 = por %p97, %p98
      %p100 = scmp.ne.s32.totalorder %s88, %s89
      %p101 = scmp.eq.s32.totalorder %s23, 3
      %p102 = por %p100, %p101
      %p104 = scmp.ne.s32.totalorder %s89, %s103
      %p105 = scmp.eq.s32.totalorder %s23, 0
      %p106 = por %p104, %p105
      %s108 = sadd.s32 %s107, 1
      %p111 = scmp.eq.s32.totalorder %s17, 3
      %p112 = scmp.ne.s32.totalorder %s107, %s109
      %p113 = scmp.eq.s32.totalorder %s17, 0
      %p114 = por %p112, %p113
      %p115 = scmp.ne.s32.totalorder %s107, %s109
      %p116 = scmp.eq.s32.totalorder %s22, 3
      %p117 = por %p115, %p116
      %p118 = scmp.ne.s32.totalorder %s109, %s110
      %p119 = scmp.eq.s32.totalorder %s22, 0
      %p120 = por %p118, %p119
      %p121 = scmp.ne.s32.totalorder %s109, %s110
      %p122 = scmp.eq.s32.totalorder %s23, 3
      %p123 = por %p121, %p122
      %p125 = scmp.ne.s32.totalorder %s110, %s124
      %p126 = scmp.eq.s32.totalorder %s23, 0
      %p127 = por %p125, %p126
      %s129 = sadd.s32 %s128, 1
      %p132 = scmp.eq.s32.totalorder %s17, 3
      %p133 = scmp.ne.s32.totalorder %s128, %s130
      %p134 = scmp.eq.s32.totalorder %s17, 0
      %p135 = por %p133, %p134
      %p136 = scmp.ne.s32.totalorder %s128, %s130
      %p137 = scmp.eq.s32.totalorder %s22, 3
      %p138 = por %p136, %p137
      %p139 = scmp.ne.s32.totalorder %s130, %s131
      %p140 = scmp.eq.s32.totalorder %s22, 0
      %p141 = por %p139, %p140
      %p142 = scmp.ne.s32.totalorder %s130, %s131
      %p143 = scmp.eq.s32.totalorder %s23, 3
      %p144 = por %p142, %p143
      %p146 = scmp.ne.s32.totalorder %s131, %s145
      %p147 = scmp.eq.s32.totalorder %s23, 0
      %p148 = por %p146, %p147
      %s150 = sadd.s32 %s149, 1
      %p153 = scmp.eq.s32.totalorder %s17, 3
      %p154 = scmp.ne.s32.totalorder %s149, %s151
      %p155 = scmp.eq.s32.totalorder %s17, 0
      %p156 = por %p154, %p155
      %p157 = scmp.ne.s32.totalorder %s149, %s151
      %p158 = scmp.eq.s32.totalorder %s22, 3
      %p159 = por %p157, %p158
      %p160 = scmp.ne.s32.totalorder %s151, %s152
      %p161 = scmp.eq.s32.totalorder %s22, 0
      %p162 = por %p160, %p161
      %p163 = scmp.ne.s32.totalorder %s151, %s152
      %p164 = scmp.eq.s32.totalorder %s23, 3
      %p165 = por %p163, %p164
      %p167 = scmp.ne.s32.totalorder %s152, %s166
      %p168 = scmp.eq.s32.totalorder %s23, 0
      %p169 = por %p167, %p168
      %s171 = sadd.s32 %s170, 1
      %p174 = scmp.eq.s32.totalorder %s17, 3
      %p175 = scmp.ne.s32.totalorder %s170, %s172
      %p176 = scmp.eq.s32.totalorder %s17, 0
      %p177 = por %p175, %p176
      %p178 = scmp.ne.s32.totalorder %s170, %s172
      %p179 = scmp.eq.s32.totalorder %s22, 3
      %p180 = por %p178, %p179
      %p181 = scmp.ne.s32.totalorder %s172, %s173
      %p182 = scmp.eq.s32.totalorder %s22, 0
      %p183 = por %p181, %p182
      %p184 = scmp.ne.s32.totalorder %s172, %s173
      %p185 = scmp.eq.s32.totalorder %s23, 3
      %p186 = por %p184, %p185
      %p188 = scmp.ne.s32.totalorder %s173, %s187
      %p189 = scmp.eq.s32.totalorder %s23, 0
      %p190 = por %p188, %p189
      %s191 = ssub.s32 %s24, %s36
      %s192 = ssub.s32 %s25, %s32
      %s193 = sor.u32 %s191, %s192
      %p194 = scmp.eq.s32.totalorder %s193, 0
      %s196 = sadd.s32 %s195, 1
      %s197 = scalar_select %p194, %s195, %s196
      %p200 = pneg %p194
      %p201 = scmp.eq.s32.totalorder %s17, 3
      %p202 = por %p200, %p201
      %p203 = scmp.ne.s32.totalorder %s195, %s198
      %p204 = scmp.eq.s32.totalorder %s17, 0
      %p205 = por %p203, %p204
      %p206 = scmp.ne.s32.totalorder %s195, %s198
      %p207 = scmp.eq.s32.totalorder %s22, 3
      %p208 = por %p206, %p207
      %p209 = scmp.ne.s32.totalorder %s198, %s199
      %p210 = scmp.eq.s32.totalorder %s22, 0
      %p211 = por %p209, %p210
      %p212 = scmp.ne.s32.totalorder %s198, %s199
      %p213 = scmp.eq.s32.totalorder %s23, 3
      %p214 = por %p212, %p213
      %p216 = scmp.ne.s32.totalorder %s199, %s215
      %p217 = scmp.eq.s32.totalorder %s23, 0
      %p218 = por %p216, %p217
      %p219 = scmp.le.s32.totalorder 1, %s17
      %p220 = scmp.lt.s32.totalorder %s17, 5
      %p221 = pnand %p219, %p220
      %p222 = pneg %p221
      // Predicated region
      $region9: #{tpu_custom_call.1} parent=5 // pred_check
        _
      $region10: #{tpu_custom_call.1} parent=5 // pred_check_branch
        %224 = sbr.rel (%p221) target = $region12
      $region11: #{tpu_custom_call.1} parent=5 // pred_region
        %s225 = ssub.s32 %s17, 1
        // Predicated region
        $region13: #{tpu_custom_call.1} parent=11 // pred_check
          %p226 = pneg %p78
        $region14: #{tpu_custom_call.1} parent=11 // pred_check_branch
          %228 = sbr.rel (%p226) target = $region16
        $region15: #{tpu_custom_call.1} parent=11 // pred_region
          _
        $region16: #{tpu_custom_call.1} parent=11 // pred_fallthru
          _
        // Predicated region
        $region17: #{tpu_custom_call.1} parent=11 // pred_check
          %p229 = pneg %p99
        $region18: #{tpu_custom_call.1} parent=11 // pred_check_branch
          %231 = sbr.rel (%p229) target = $region20
        $region19: #{tpu_custom_call.1} parent=11 // pred_region
          _
        $region20: #{tpu_custom_call.1} parent=11 // pred_fallthru
          _
        // Predicated region
        $region21: #{tpu_custom_call.1} parent=11 // pred_check
          %p232 = pneg %p120
        $region22: #{tpu_custom_call.1} parent=11 // pred_check_branch
          %234 = sbr.rel (%p232) target = $region24
        $region23: #{tpu_custom_call.1} parent=11 // pred_region
          _
        $region24: #{tpu_custom_call.1} parent=11 // pred_fallthru
          _
        // Predicated region
        $region25: #{tpu_custom_call.1} parent=11 // pred_check
          %p235 = pneg %p141
        $region26: #{tpu_custom_call.1} parent=11 // pred_check_branch
          %237 = sbr.rel (%p235) target = $region28
        $region27: #{tpu_custom_call.1} parent=11 // pred_region
          _
        $region28: #{tpu_custom_call.1} parent=11 // pred_fallthru
          _
        // Predicated region
        $region29: #{tpu_custom_call.1} parent=11 // pred_check
          %p238 = pneg %p162
        $region30: #{tpu_custom_call.1} parent=11 // pred_check_branch
          %240 = sbr.rel (%p238) target = $region32
        $region31: #{tpu_custom_call.1} parent=11 // pred_region
          %s242 = ssub.s32 8192, 8192
          %243 = vsyncadd [#allocation3], %s242
          %s244 = sshll.u32 [#allocation2], 4
          %s245 = int_to_ptr.vmem [resolvable:$true] %s244
          %250 = dma.hbm_to_vmem [thread:$0]  %s5, 8192, %s245, [#allocation3], 512, 512, 32
        $region32: #{tpu_custom_call.1} parent=11 // pred_fallthru
          _
        // Predicated region
        $region33: #{tpu_custom_call.1} parent=11 // pred_check
          %p251 = pneg %p183
        $region34: #{tpu_custom_call.1} parent=11 // pred_check_branch
          %253 = sbr.rel (%p251) target = $region36
        $region35: #{tpu_custom_call.1} parent=11 // pred_region
          _
        $region36: #{tpu_custom_call.1} parent=11 // pred_fallthru
          _
      $region12: #{tpu_custom_call.1} parent=5 // pred_fallthru
        _
      %p254 = scmp.lt.s32.totalorder %s17, 4
      // Predicated region
      $region37: #{tpu_custom_call.1} parent=5 // pred_check
        %p255 = pneg %p254
      $region38: #{tpu_custom_call.1} parent=5 // pred_check_branch
        %257 = sbr.rel (%p255) target = $region40
      $region39: #{tpu_custom_call.1} parent=5 // pred_region
        // Predicated region
        $region41: #{tpu_custom_call.1} parent=39 // pred_check
          %p258 = pneg %p51
        $region42: #{tpu_custom_call.1} parent=39 // pred_check_branch
          %260 = sbr.rel (%p258) target = $region44
        $region43: #{tpu_custom_call.1} parent=39 // pred_region
          %s261 = smul.u32 2, %s25
          %p262 = scmp.lt.s32.totalorder %s24, 1
          %s263 = scalar_select %p262, %s24, 1
          %p264 = scmp.lt.s32.totalorder %s261, 3
          %s265 = scalar_select %p264, %s261, 3
          %s266 = smul.addr %s263, 4
          %s267 = sadd.s32 %s265, %s266
          %s268 = smul.addr %s267, 8
          %s269 = scalar_lea.vmem %s0, %s268
          %s270 = smul.u32 2, %s25
        $region44: #{tpu_custom_call.1} parent=39 // pred_fallthru
          _
      $region40: #{tpu_custom_call.1} parent=5 // pred_fallthru
        _
      %p271 = scmp.le.s32.totalorder 1, %s17
      %p272 = scmp.lt.s32.totalorder %s17, 5
      %p273 = pnand %p271, %p272
      %p274 = pneg %p273
      // Predicated region
      $region45: #{tpu_custom_call.1} parent=5 // pred_check
        _
      $region46: #{tpu_custom_call.1} parent=5 // pred_check_branch
        %276 = sbr.rel (%p273) target = $region48
      $region47: #{tpu_custom_call.1} parent=5 // pred_region
        %s277 = ssub.s32 %s17, 1
        // Predicated region
        $region49: #{tpu_custom_call.1} parent=47 // pred_check
          %p278 = pneg %p162
        $region50: #{tpu_custom_call.1} parent=47 // pred_check_branch
          %280 = sbr.rel (%p278) target = $region52
        $region51: #{tpu_custom_call.1} parent=47 // pred_region
          %281 = dma.done [#allocation3], 8192
        $region52: #{tpu_custom_call.1} parent=47 // pred_fallthru
          _
        %s282 = smul.u32 2, %s27
        %p283 = scmp.lt.s32.totalorder %s26, 1
        %s284 = scalar_select %p283, %s26, 1
        %p285 = scmp.lt.s32.totalorder %s282, 3
        %s286 = scalar_select %p285, %s282, 3
        %s287 = smul.addr %s284, 4
        %s288 = sadd.s32 %s286, %s287
        %s289 = smul.addr %s288, 8
        %s290 = scalar_lea.vmem %s0, %s289
        %p291 = pneg %p57
        %p292 = pneg %p54
        %p293 = pneg %p78
        %p294 = pneg %p75
        %p295 = pneg %p99
        %p296 = pneg %p96
        %p297 = pneg %p120
        %p298 = pneg %p117
        %p299 = pneg %p141
        %p300 = pneg %p138
        %p301 = pneg %p162
        %p302 = pneg %p159
        %p303 = pneg %p183
        %p304 = pneg %p180
        %p305 = pneg %p211
        %p306 = pneg %p208
        %s307 = sand.u32 %s198, 1
        %s308 = scalar_lea.sflag [#allocation4], %s307
        %s309 = sand.u32 %s198, 1
        %s310 = smul.addr %s309, 64
        %s311 = scalar_lea.vmem [#allocation5], %s310
        %s312 = smul.u32 2, %s27
        %p313 = scmp.lt.s32.totalorder %s26, 1
        %s314 = scalar_select %p313, %s26, 1
        %p315 = scmp.lt.s32.totalorder %s312, 3
        %s316 = scalar_select %p315, %s312, 3
        %s317 = smul.addr %s314, 4
        %s318 = sadd.s32 %s316, %s317
        %s319 = smul.addr %s318, 8
        %s320 = scalar_lea.vmem %s0, %s319
        %s321 = smul.u32 2, %s27
        %s322 = smul.u32 2, %s27
        %v324 = vld [vmem:[%s320] sm:$0xff]
        %v325 = vld [vmem:[%s320 + $0x8] sm:$0xff]
        %v326 = vld [vmem:[%s1] sm:$0x7]
        %328 = vset.pattern.permute.xlu0 0
        %329 = vperm.xlu0 %328, %v324
        %v330 = vpop.permute.xlu0 %329
        %333 = vset.pattern.permute.xlu0 0
        %334 = vperm.xlu0 %333, %v325
        %v335 = vpop.permute.xlu0 %334
        %v337 = vlaneseq
        %v338 = vshrl.u32 %v337, 7
        %v339 = vsub.s32 0, %v338
        %v340 = vrot.slane %v326, %v339
        %v341 = vmul.f32 %v330, %v340
        %v342 = vmul.f32 %v335, %v340
        %v343 = vld [vmem:[%s2] sm:$0x1]
        %v345 = vlaneseq
        %v346 = vshrl.u32 %v345, 7
        %v347 = vsub.s32 0, %v346
        %v348 = vrot.slane %v343, %v347
        %v350 = vadd.f32 %v341, %v348
        %v351 = vadd.f32 %v342, %v348
        %352 = vset.pattern.permute.xlu0 1
        %353 = vperm.xlu0 %352, %v324
        %v354 = vpop.permute.xlu0 %353
        %356 = vset.pattern.permute.xlu0 1
        %357 = vperm.xlu0 %356, %v325
        %v358 = vpop.permute.xlu0 %357
        %v360 = vlaneseq
        %v361 = vshrl.u32 %v360, 7
        %v362 = vsub.s32 1, %v361
        %v363 = vrot.slane %v326, %v362
        %v364 = vmul.f32 %v354, %v363
        %v365 = vmul.f32 %v358, %v363
        %v366 = vadd.f32 %v350, %v364
        %v367 = vadd.f32 %v351, %v365
        %368 = vset.pattern.permute.xlu0 2
        %369 = vperm.xlu0 %368, %v324
        %v370 = vpop.permute.xlu0 %369
        %372 = vset.pattern.permute.xlu0 2
        %373 = vperm.xlu0 %372, %v325
        %v374 = vpop.permute.xlu0 %373
        %v376 = vlaneseq
        %v377 = vshrl.u32 %v376, 7
        %v378 = vsub.s32 2, %v377
        %v379 = vrot.slane %v326, %v378
        %v380 = vmul.f32 %v370, %v379
        %v381 = vmul.f32 %v374, %v379
        %v382 = vadd.f32 %v366, %v380
        %v383 = vadd.f32 %v367, %v381
        %v384 = vmax.f32 %v382, 0.0
        %v385 = vmax.f32 %v383, 0.0
        %v386 = vpack.c.bf16 %v385, %v384
        %v387 = vld [vmem:[%s3] sm:$0xf]
        %v388 = vld [vmem:[%s3 + $0x4] sm:$0xf]
        %v389 = vld [vmem:[%s3 + $0x8] sm:$0xf]
        %v390 = vld [vmem:[%s3 + $0xc] sm:$0xf]
        %v391 = vld [vmem:[%s3 + $0x10] sm:$0xf]
        %v392 = vld [vmem:[%s3 + $0x14] sm:$0xf]
        %v393 = vld [vmem:[%s3 + $0x18] sm:$0xf]
        %v394 = vld [vmem:[%s3 + $0x1c] sm:$0xf]
        %v395 = vld [vmem:[%s4] sm:$0x1]
        %v397 = vlaneseq
        %v398 = vshrl.u32 %v397, 7
        %v399 = vsub.s32 0, %v398
        %v400 = vrot.slane %v395, %v399
        %v410 = vunpack.c.l.b16 %v387
        %v411 = vunpack.c.l.b16 %v388
        %v412 = vunpack.c.l.b16 %v389
        %v413 = vunpack.c.l.b16 %v390
        %v414 = vunpack.c.l.b16 %v391
        %v415 = vunpack.c.l.b16 %v392
        %v416 = vunpack.c.l.b16 %v393
        %v417 = vunpack.c.l.b16 %v394
        %v418 = vpack.c.b16 %v411, %v410
        %v419 = vpack.c.b16 %v413, %v412
        %v420 = vpack.c.b16 %v415, %v414
        %v421 = vpack.c.b16 %v417, %v416
        %vm426 = vcmask 523264
        %v428 = vsel %vm426, %v386, 0
        %430 = vmatprep.subr.bf16.mxu0 0
        %431 = vmatpush1.bf16.msra.mxu0 %v418
        %432 = vmatprep.subr.bf16.mxu0 0
        %433 = vmatpush1.bf16.msra.mxu0 %v419
        %434 = vmatprep.subr.bf16.mxu0 0
        %435 = vmatpush1.bf16.msra.mxu0 %v420
        %436 = vmatprep.subr.bf16.mxu0 0
        %437 = vmatpush1.bf16.msra.mxu0 %v421
        %438 = vmatprep.subr.bf16.mxu0 0
        %439 = vmatpush1.bf16.msra.mxu0 0
        %440 = vmatprep.subr.bf16.mxu0 0
        %441 = vmatpush1.bf16.msra.mxu0 0
        %442 = vmatprep.subr.bf16.mxu0 0
        %443 = vmatpush1.bf16.msra.mxu0 0
        %444 = vmatprep.subr.bf16.mxu0 0
        %445 = vmatpush1.bf16.msra.mxu0 0
        %446 = vmatprep.subr.bf16.mxu0 0
        %447 = vmatpush1.bf16.msra.mxu0 0
        %448 = vmatprep.subr.bf16.mxu0 0
        %449 = vmatpush1.bf16.msra.mxu0 0
        %450 = vmatprep.subr.bf16.mxu0 0
        %451 = vmatpush1.bf16.msra.mxu0 0
        %452 = vmatprep.subr.bf16.mxu0 0
        %453 = vmatpush1.bf16.msra.mxu0 0
        %454 = vmatprep.subr.bf16.mxu0 0
        %455 = vmatpush1.bf16.msra.mxu0 0
        %456 = vmatprep.subr.bf16.mxu0 0
        %457 = vmatpush1.bf16.msra.mxu0 0
        %458 = vmatprep.subr.bf16.mxu0 0
        %459 = vmatpush1.bf16.msra.mxu0 0
        %460 = vmatprep.subr.bf16.mxu0 0
        %461 = vmatpush1.bf16.msra.mxu0 0
        %462 = vmatprep.mubr.bf16.mxu0 0
        %463 = vmatmul.mubr.bf16.gmra.mrb[0].mxu0 %v428
        %v464 = vpop.f32.mrb[0].mxu0
        %v465 = vadd.f32 %v400, %v464
        %v466 = vpop.f32.mrb[0].mxu0
        %v467 = vpop.f32.mrb[0].mxu0
        %v468 = vadd.f32 %v400, %v467
        %v469 = vpop.f32.mrb[0].mxu0
        %470 = vdwg.mxu0
        %v471 = vmax.f32 %v465, 0.0
        %v472 = vmax.f32 %v468, 0.0
        %v473 = vpack.c.bf16 %v472, %v471
        %v474 = vld [vmem:[#allocation2] sm:$0xff]
        %v475 = vld [vmem:[#allocation2 + $0x8] sm:$0xff]
        %v476 = vld [vmem:[#allocation2 + $0x10] sm:$0xff]
        %v477 = vld [vmem:[#allocation2 + $0x18] sm:$0xff]
        %v478 = vld [vmem:[#allocation2 + $0x20] sm:$0xff]
        %v479 = vld [vmem:[#allocation2 + $0x28] sm:$0xff]
        %v480 = vld [vmem:[#allocation2 + $0x30] sm:$0xff]
        %v481 = vld [vmem:[#allocation2 + $0x38] sm:$0xff]
        %v482 = vld [vmem:[#allocation2 + $0x40] sm:$0xff]
        %v483 = vld [vmem:[#allocation2 + $0x48] sm:$0xff]
        %v484 = vld [vmem:[#allocation2 + $0x50] sm:$0xff]
        %v485 = vld [vmem:[#allocation2 + $0x58] sm:$0xff]
        %v486 = vld [vmem:[#allocation2 + $0x60] sm:$0xff]
        %v487 = vld [vmem:[#allocation2 + $0x68] sm:$0xff]
        %v488 = vld [vmem:[#allocation2 + $0x70] sm:$0xff]
        %v489 = vld [vmem:[#allocation2 + $0x78] sm:$0xff]
        %v490 = vld [vmem:[#allocation2 + $0x80] sm:$0xff]
        %v491 = vld [vmem:[#allocation2 + $0x88] sm:$0xff]
        %v492 = vld [vmem:[#allocation2 + $0x90] sm:$0xff]
        %v493 = vld [vmem:[#allocation2 + $0x98] sm:$0xff]
        %v494 = vld [vmem:[#allocation2 + $0xa0] sm:$0xff]
        %v495 = vld [vmem:[#allocation2 + $0xa8] sm:$0xff]
        %v496 = vld [vmem:[#allocation2 + $0xb0] sm:$0xff]
        %v497 = vld [vmem:[#allocation2 + $0xb8] sm:$0xff]
        %v498 = vld [vmem:[#allocation2 + $0xc0] sm:$0xff]
        %v499 = vld [vmem:[#allocation2 + $0xc8] sm:$0xff]
        %v500 = vld [vmem:[#allocation2 + $0xd0] sm:$0xff]
        %v501 = vld [vmem:[#allocation2 + $0xd8] sm:$0xff]
        %v502 = vld [vmem:[#allocation2 + $0xe0] sm:$0xff]
        %v503 = vld [vmem:[#allocation2 + $0xe8] sm:$0xff]
        %v504 = vld [vmem:[#allocation2 + $0xf0] sm:$0xff]
        %v505 = vld [vmem:[#allocation2 + $0xf8] sm:$0xff]
        %v506 = vld [vmem:[#allocation2 + $0x100] sm:$0xff]
        %v507 = vld [vmem:[#allocation2 + $0x108] sm:$0xff]
        %v508 = vld [vmem:[#allocation2 + $0x110] sm:$0xff]
        %v509 = vld [vmem:[#allocation2 + $0x118] sm:$0xff]
        %v510 = vld [vmem:[#allocation2 + $0x120] sm:$0xff]
        %v511 = vld [vmem:[#allocation2 + $0x128] sm:$0xff]
        %v512 = vld [vmem:[#allocation2 + $0x130] sm:$0xff]
        %v513 = vld [vmem:[#allocation2 + $0x138] sm:$0xff]
        %v514 = vld [vmem:[#allocation2 + $0x140] sm:$0xff]
        %v515 = vld [vmem:[#allocation2 + $0x148] sm:$0xff]
        %v516 = vld [vmem:[#allocation2 + $0x150] sm:$0xff]
        %v517 = vld [vmem:[#allocation2 + $0x158] sm:$0xff]
        %v518 = vld [vmem:[#allocation2 + $0x160] sm:$0xff]
        %v519 = vld [vmem:[#allocation2 + $0x168] sm:$0xff]
        %v520 = vld [vmem:[#allocation2 + $0x170] sm:$0xff]
        %v521 = vld [vmem:[#allocation2 + $0x178] sm:$0xff]
        %v522 = vld [vmem:[#allocation2 + $0x180] sm:$0xff]
        %v523 = vld [vmem:[#allocation2 + $0x188] sm:$0xff]
        %v524 = vld [vmem:[#allocation2 + $0x190] sm:$0xff]
        %v525 = vld [vmem:[#allocation2 + $0x198] sm:$0xff]
        %v526 = vld [vmem:[#allocation2 + $0x1a0] sm:$0xff]
        %v527 = vld [vmem:[#allocation2 + $0x1a8] sm:$0xff]
        %v528 = vld [vmem:[#allocation2 + $0x1b0] sm:$0xff]
        %v529 = vld [vmem:[#allocation2 + $0x1b8] sm:$0xff]
        %v530 = vld [vmem:[#allocation2 + $0x1c0] sm:$0xff]
        %v531 = vld [vmem:[#allocation2 + $0x1c8] sm:$0xff]
        %v532 = vld [vmem:[#allocation2 + $0x1d0] sm:$0xff]
        %v533 = vld [vmem:[#allocation2 + $0x1d8] sm:$0xff]
        %v534 = vld [vmem:[#allocation2 + $0x1e0] sm:$0xff]
        %v535 = vld [vmem:[#allocation2 + $0x1e8] sm:$0xff]
        %v536 = vld [vmem:[#allocation2 + $0x1f0] sm:$0xff]
        %v537 = vld [vmem:[#allocation2 + $0x1f8] sm:$0xff]
        %v538 = vld [vmem:[%s6] sm:$0xff]
        %v540 = vlaneseq
        %v541 = vshrl.u32 %v540, 7
        %v542 = vsub.s32 0, %v541
        %v543 = vrot.slane %v538, %v542
        %v544 = vlaneseq
        %v545 = vshrl.u32 %v544, 7
        %v546 = vsub.s32 1, %v545
        %v547 = vrot.slane %v538, %v546
        %v548 = vlaneseq
        %v549 = vshrl.u32 %v548, 7
        %v550 = vsub.s32 2, %v549
        %v551 = vrot.slane %v538, %v550
        %v552 = vlaneseq
        %v553 = vshrl.u32 %v552, 7
        %v554 = vsub.s32 3, %v553
        %v555 = vrot.slane %v538, %v554
        %v556 = vlaneseq
        %v557 = vshrl.u32 %v556, 7
        %v558 = vsub.s32 4, %v557
        %v559 = vrot.slane %v538, %v558
        %v560 = vlaneseq
        %v561 = vshrl.u32 %v560, 7
        %v562 = vsub.s32 5, %v561
        %v563 = vrot.slane %v538, %v562
        %v564 = vlaneseq
        %v565 = vshrl.u32 %v564, 7
        %v566 = vsub.s32 6, %v565
        %v567 = vrot.slane %v538, %v566
        %v568 = vlaneseq
        %v569 = vshrl.u32 %v568, 7
        %v570 = vsub.s32 7, %v569
        %v571 = vrot.slane %v538, %v570
        %v644 = vunpack.c.l.b16 %v474
        %v645 = vunpack.c.h.b16 %v474
        %v646 = vunpack.c.l.b16 %v475
        %v647 = vunpack.c.h.b16 %v475
        %v648 = vunpack.c.l.b16 %v476
        %v649 = vunpack.c.h.b16 %v476
        %v650 = vunpack.c.l.b16 %v477
        %v651 = vunpack.c.h.b16 %v477
        %v652 = vunpack.c.l.b16 %v478
        %v653 = vunpack.c.h.b16 %v478
        %v654 = vunpack.c.l.b16 %v479
        %v655 = vunpack.c.h.b16 %v479
        %v656 = vunpack.c.l.b16 %v480
        %v657 = vunpack.c.h.b16 %v480
        %v658 = vunpack.c.l.b16 %v481
        %v659 = vunpack.c.h.b16 %v481
        %v660 = vunpack.c.l.b16 %v482
        %v661 = vunpack.c.h.b16 %v482
        %v662 = vunpack.c.l.b16 %v483
        %v663 = vunpack.c.h.b16 %v483
        %v664 = vunpack.c.l.b16 %v484
        %v665 = vunpack.c.h.b16 %v484
        %v666 = vunpack.c.l.b16 %v485
        %v667 = vunpack.c.h.b16 %v485
        %v668 = vunpack.c.l.b16 %v486
        %v669 = vunpack.c.h.b16 %v486
        %v670 = vunpack.c.l.b16 %v487
        %v671 = vunpack.c.h.b16 %v487
        %v672 = vunpack.c.l.b16 %v488
        %v673 = vunpack.c.h.b16 %v488
        %v674 = vunpack.c.l.b16 %v489
        %v675 = vunpack.c.h.b16 %v489
        %v676 = vunpack.c.l.b16 %v490
        %v677 = vunpack.c.h.b16 %v490
        %v678 = vunpack.c.l.b16 %v491
        %v679 = vunpack.c.h.b16 %v491
        %v680 = vunpack.c.l.b16 %v492
        %v681 = vunpack.c.h.b16 %v492
        %v682 = vunpack.c.l.b16 %v493
        %v683 = vunpack.c.h.b16 %v493
        %v684 = vunpack.c.l.b16 %v494
        %v685 = vunpack.c.h.b16 %v494
        %v686 = vunpack.c.l.b16 %v495
        %v687 = vunpack.c.h.b16 %v495
        %v688 = vunpack.c.l.b16 %v496
        %v689 = vunpack.c.h.b16 %v496
        %v690 = vunpack.c.l.b16 %v497
        %v691 = vunpack.c.h.b16 %v497
        %v692 = vunpack.c.l.b16 %v498
        %v693 = vunpack.c.h.b16 %v498
        %v694 = vunpack.c.l.b16 %v499
        %v695 = vunpack.c.h.b16 %v499
        %v696 = vunpack.c.l.b16 %v500
        %v697 = vunpack.c.h.b16 %v500
        %v698 = vunpack.c.l.b16 %v501
        %v699 = vunpack.c.h.b16 %v501
        %v700 = vunpack.c.l.b16 %v502
        %v701 = vunpack.c.h.b16 %v502
        %v702 = vunpack.c.l.b16 %v503
        %v703 = vunpack.c.h.b16 %v503
        %v704 = vunpack.c.l.b16 %v504
        %v705 = vunpack.c.h.b16 %v504
        %v706 = vunpack.c.l.b16 %v505
        %v707 = vunpack.c.h.b16 %v505
        %v708 = vunpack.c.l.b16 %v506
        %v709 = vunpack.c.h.b16 %v506
        %v710 = vunpack.c.l.b16 %v507
        %v711 = vunpack.c.h.b16 %v507
        %v712 = vunpack.c.l.b16 %v508
        %v713 = vunpack.c.h.b16 %v508
        %v714 = vunpack.c.l.b16 %v509
        %v715 = vunpack.c.h.b16 %v509
        %v716 = vunpack.c.l.b16 %v510
        %v717 = vunpack.c.h.b16 %v510
        %v718 = vunpack.c.l.b16 %v511
        %v719 = vunpack.c.h.b16 %v511
        %v720 = vunpack.c.l.b16 %v512
        %v721 = vunpack.c.h.b16 %v512
        %v722 = vunpack.c.l.b16 %v513
        %v723 = vunpack.c.h.b16 %v513
        %v724 = vunpack.c.l.b16 %v514
        %v725 = vunpack.c.h.b16 %v514
        %v726 = vunpack.c.l.b16 %v515
        %v727 = vunpack.c.h.b16 %v515
        %v728 = vunpack.c.l.b16 %v516
        %v729 = vunpack.c.h.b16 %v516
        %v730 = vunpack.c.l.b16 %v517
        %v731 = vunpack.c.h.b16 %v517
        %v732 = vunpack.c.l.b16 %v518
        %v733 = vunpack.c.h.b16 %v518
        %v734 = vunpack.c.l.b16 %v519
        %v735 = vunpack.c.h.b16 %v519
        %v736 = vunpack.c.l.b16 %v520
        %v737 = vunpack.c.h.b16 %v520
        %v738 = vunpack.c.l.b16 %v521
        %v739 = vunpack.c.h.b16 %v521
        %v740 = vunpack.c.l.b16 %v522
        %v741 = vunpack.c.h.b16 %v522
        %v742 = vunpack.c.l.b16 %v523
        %v743 = vunpack.c.h.b16 %v523
        %v744 = vunpack.c.l.b16 %v524
        %v745 = vunpack.c.h.b16 %v524
        %v746 = vunpack.c.l.b16 %v525
        %v747 = vunpack.c.h.b16 %v525
        %v748 = vunpack.c.l.b16 %v526
        %v749 = vunpack.c.h.b16 %v526
        %v750 = vunpack.c.l.b16 %v527
        %v751 = vunpack.c.h.b16 %v527
        %v752 = vunpack.c.l.b16 %v528
        %v753 = vunpack.c.h.b16 %v528
        %v754 = vunpack.c.l.b16 %v529
        %v755 = vunpack.c.h.b16 %v529
        %v756 = vunpack.c.l.b16 %v530
        %v757 = vunpack.c.h.b16 %v530
        %v758 = vunpack.c.l.b16 %v531
        %v759 = vunpack.c.h.b16 %v531
        %v760 = vunpack.c.l.b16 %v532
        %v761 = vunpack.c.h.b16 %v532
        %v762 = vunpack.c.l.b16 %v533
        %v763 = vunpack.c.h.b16 %v533
        %v764 = vunpack.c.l.b16 %v534
        %v765 = vunpack.c.h.b16 %v534
        %v766 = vunpack.c.l.b16 %v535
        %v767 = vunpack.c.h.b16 %v535
        %v768 = vunpack.c.l.b16 %v536
        %v769 = vunpack.c.h.b16 %v536
        %v770 = vunpack.c.l.b16 %v537
        %v771 = vunpack.c.h.b16 %v537
        %v772 = vpack.c.b16 %v652, %v644
        %v773 = vpack.c.b16 %v653, %v645
        %v774 = vpack.c.b16 %v654, %v646
        %v775 = vpack.c.b16 %v655, %v647
        %v776 = vpack.c.b16 %v656, %v648
        %v777 = vpack.c.b16 %v657, %v649
        %v778 = vpack.c.b16 %v658, %v650
        %v779 = vpack.c.b16 %v659, %v651
        %v780 = vpack.c.b16 %v668, %v660
        %v781 = vpack.c.b16 %v669, %v661
        %v782 = vpack.c.b16 %v670, %v662
        %v783 = vpack.c.b16 %v671, %v663
        %v784 = vpack.c.b16 %v672, %v664
        %v785 = vpack.c.b16 %v673, %v665
        %v786 = vpack.c.b16 %v674, %v666
        %v787 = vpack.c.b16 %v675, %v667
        %v788 = vpack.c.b16 %v684, %v676
        %v789 = vpack.c.b16 %v685, %v677
        %v790 = vpack.c.b16 %v686, %v678
        %v791 = vpack.c.b16 %v687, %v679
        %v792 = vpack.c.b16 %v688, %v680
        %v793 = vpack.c.b16 %v689, %v681
        %v794 = vpack.c.b16 %v690, %v682
        %v795 = vpack.c.b16 %v691, %v683
        %v796 = vpack.c.b16 %v700, %v692
        %v797 = vpack.c.b16 %v701, %v693
        %v798 = vpack.c.b16 %v702, %v694
        %v799 = vpack.c.b16 %v703, %v695
        %v800 = vpack.c.b16 %v704, %v696
        %v801 = vpack.c.b16 %v705, %v697
        %v802 = vpack.c.b16 %v706, %v698
        %v803 = vpack.c.b16 %v707, %v699
        %v804 = vpack.c.b16 %v716, %v708
        %v805 = vpack.c.b16 %v717, %v709
        %v806 = vpack.c.b16 %v718, %v710
        %v807 = vpack.c.b16 %v719, %v711
        %v808 = vpack.c.b16 %v720, %v712
        %v809 = vpack.c.b16 %v721, %v713
        %v810 = vpack.c.b16 %v722, %v714
        %v811 = vpack.c.b16 %v723, %v715
        %v812 = vpack.c.b16 %v732, %v724
        %v813 = vpack.c.b16 %v733, %v725
        %v814 = vpack.c.b16 %v734, %v726
        %v815 = vpack.c.b16 %v735, %v727
        %v816 = vpack.c.b16 %v736, %v728
        %v817 = vpack.c.b16 %v737, %v729
        %v818 = vpack.c.b16 %v738, %v730
        %v819 = vpack.c.b16 %v739, %v731
        %v820 = vpack.c.b16 %v748, %v740
        %v821 = vpack.c.b16 %v749, %v741
        %v822 = vpack.c.b16 %v750, %v742
        %v823 = vpack.c.b16 %v751, %v743
        %v824 = vpack.c.b16 %v752, %v744
        %v825 = vpack.c.b16 %v753, %v745
        %v826 = vpack.c.b16 %v754, %v746
        %v827 = vpack.c.b16 %v755, %v747
        %v828 = vpack.c.b16 %v764, %v756
        %v829 = vpack.c.b16 %v765, %v757
        %v830 = vpack.c.b16 %v766, %v758
        %v831 = vpack.c.b16 %v767, %v759
        %v832 = vpack.c.b16 %v768, %v760
        %v833 = vpack.c.b16 %v769, %v761
        %v834 = vpack.c.b16 %v770, %v762
        %v835 = vpack.c.b16 %v771, %v763
        %900 = vmatprep.subr.bf16.mxu0 %v773
        %901 = vmatpush1.bf16.msra.mxu0 %v772
        %902 = vmatprep.subr.bf16.mxu0 %v781
        %903 = vmatpush1.bf16.msra.mxu0 %v780
        %904 = vmatprep.subr.bf16.mxu0 %v789
        %905 = vmatpush1.bf16.msra.mxu0 %v788
        %906 = vmatprep.subr.bf16.mxu0 %v797
        %907 = vmatpush1.bf16.msra.mxu0 %v796
        %908 = vmatprep.subr.bf16.mxu0 %v805
        %909 = vmatpush1.bf16.msra.mxu0 %v804
        %910 = vmatprep.subr.bf16.mxu0 %v813
        %911 = vmatpush1.bf16.msra.mxu0 %v812
        %912 = vmatprep.subr.bf16.mxu0 %v821
        %913 = vmatpush1.bf16.msra.mxu0 %v820
        %914 = vmatprep.subr.bf16.mxu0 %v829
        %915 = vmatpush1.bf16.msra.mxu0 %v828
        %916 = vmatprep.subr.bf16.mxu0 0
        %917 = vmatpush1.bf16.msra.mxu0 0
        %918 = vmatprep.subr.bf16.mxu0 0
        %919 = vmatpush1.bf16.msra.mxu0 0
        %920 = vmatprep.subr.bf16.mxu0 0
        %921 = vmatpush1.bf16.msra.mxu0 0
        %922 = vmatprep.subr.bf16.mxu0 0
        %923 = vmatpush1.bf16.msra.mxu0 0
        %924 = vmatprep.subr.bf16.mxu0 0
        %925 = vmatpush1.bf16.msra.mxu0 0
        %926 = vmatprep.subr.bf16.mxu0 0
        %927 = vmatpush1.bf16.msra.mxu0 0
        %928 = vmatprep.subr.bf16.mxu0 0
        %929 = vmatpush1.bf16.msra.mxu0 0
        %930 = vmatprep.subr.bf16.mxu0 0
        %931 = vmatpush1.bf16.msra.mxu0 0
        %932 = vmatprep.mubr.bf16.mxu0 0
        %933 = vmatmul.mubr.bf16.gmra.mrb[0].mxu0 %v473
        %v934 = vpop.f32.mrb[0].mxu0
        %v935 = vadd.f32 %v543, %v934
        %v936 = vpop.f32.mrb[0].mxu0
        %v937 = vadd.f32 %v547, %v936
        %v938 = vpop.f32.mrb[0].mxu0
        %v939 = vadd.f32 %v543, %v938
        %v940 = vpop.f32.mrb[0].mxu0
        %v941 = vadd.f32 %v547, %v940
        %942 = vdwg.mxu0
        %943 = vmatprep.subr.bf16.mxu0 %v775
        %944 = vmatpush1.bf16.msra.mxu0 %v774
        %945 = vmatprep.subr.bf16.mxu0 %v783
        %946 = vmatpush1.bf16.msra.mxu0 %v782
        %947 = vmatprep.subr.bf16.mxu0 %v791
        %948 = vmatpush1.bf16.msra.mxu0 %v790
        %949 = vmatprep.subr.bf16.mxu0 %v799
        %950 = vmatpush1.bf16.msra.mxu0 %v798
        %951 = vmatprep.subr.bf16.mxu0 %v807
        %952 = vmatpush1.bf16.msra.mxu0 %v806
        %953 = vmatprep.subr.bf16.mxu0 %v815
        %954 = vmatpush1.bf16.msra.mxu0 %v814
        %955 = vmatprep.subr.bf16.mxu0 %v823
        %956 = vmatpush1.bf16.msra.mxu0 %v822
        %957 = vmatprep.subr.bf16.mxu0 %v831
        %958 = vmatpush1.bf16.msra.mxu0 %v830
        %959 = vmatprep.subr.bf16.mxu0 0
        %960 = vmatpush1.bf16.msra.mxu0 0
        %961 = vmatprep.subr.bf16.mxu0 0
        %962 = vmatpush1.bf16.msra.mxu0 0
        %963 = vmatprep.subr.bf16.mxu0 0
        %964 = vmatpush1.bf16.msra.mxu0 0
        %965 = vmatprep.subr.bf16.mxu0 0
        %966 = vmatpush1.bf16.msra.mxu0 0
        %967 = vmatprep.subr.bf16.mxu0 0
        %968 = vmatpush1.bf16.msra.mxu0 0
        %969 = vmatprep.subr.bf16.mxu0 0
        %970 = vmatpush1.bf16.msra.mxu0 0
        %971 = vmatprep.subr.bf16.mxu0 0
        %972 = vmatpush1.bf16.msra.mxu0 0
        %973 = vmatprep.subr.bf16.mxu0 0
        %974 = vmatpush1.bf16.msra.mxu0 0
        %975 = vmatprep.mubr.bf16.mxu0 0
        %976 = vmatmul.mubr.bf16.gmra.mrb[0].mxu0 %v473
        %v977 = vpop.f32.mrb[0].mxu0
        %v978 = vadd.f32 %v551, %v977
        %v979 = vpop.f32.mrb[0].mxu0
        %v980 = vadd.f32 %v555, %v979
        %v981 = vpop.f32.mrb[0].mxu0
        %v982 = vadd.f32 %v551, %v981
        %v983 = vpop.f32.mrb[0].mxu0
        %v984 = vadd.f32 %v555, %v983
        %985 = vdwg.mxu0
        %986 = vmatprep.subr.bf16.mxu0 %v777
        %987 = vmatpush1.bf16.msra.mxu0 %v776
        %988 = vmatprep.subr.bf16.mxu0 %v785
        %989 = vmatpush1.bf16.msra.mxu0 %v784
        %990 = vmatprep.subr.bf16.mxu0 %v793
        %991 = vmatpush1.bf16.msra.mxu0 %v792
        %992 = vmatprep.subr.bf16.mxu0 %v801
        %993 = vmatpush1.bf16.msra.mxu0 %v800
        %994 = vmatprep.subr.bf16.mxu0 %v809
        %995 = vmatpush1.bf16.msra.mxu0 %v808
        %996 = vmatprep.subr.bf16.mxu0 %v817
        %997 = vmatpush1.bf16.msra.mxu0 %v816
        %998 = vmatprep.subr.bf16.mxu0 %v825
        %999 = vmatpush1.bf16.msra.mxu0 %v824
        %1000 = vmatprep.subr.bf16.mxu0 %v833
        %1001 = vmatpush1.bf16.msra.mxu0 %v832
        %1002 = vmatprep.subr.bf16.mxu0 0
        %1003 = vmatpush1.bf16.msra.mxu0 0
        %1004 = vmatprep.subr.bf16.mxu0 0
        %1005 = vmatpush1.bf16.msra.mxu0 0
        %1006 = vmatprep.subr.bf16.mxu0 0
        %1007 = vmatpush1.bf16.msra.mxu0 0
        %1008 = vmatprep.subr.bf16.mxu0 0
        %1009 = vmatpush1.bf16.msra.mxu0 0
        %1010 = vmatprep.subr.bf16.mxu0 0
        %1011 = vmatpush1.bf16.msra.mxu0 0
        %1012 = vmatprep.subr.bf16.mxu0 0
        %1013 = vmatpush1.bf16.msra.mxu0 0
        %1014 = vmatprep.subr.bf16.mxu0 0
        %1015 = vmatpush1.bf16.msra.mxu0 0
        %1016 = vmatprep.subr.bf16.mxu0 0
        %1017 = vmatpush1.bf16.msra.mxu0 0
        %1018 = vmatprep.mubr.bf16.mxu0 0
        %1019 = vmatmul.mubr.bf16.gmra.mrb[0].mxu0 %v473
        %v1020 = vpop.f32.mrb[0].mxu0
        %v1021 = vadd.f32 %v559, %v1020
        %v1022 = vpop.f32.mrb[0].mxu0
        %v1023 = vadd.f32 %v563, %v1022
        %v1024 = vpop.f32.mrb[0].mxu0
        %v1025 = vadd.f32 %v559, %v1024
        %v1026 = vpop.f32.mrb[0].mxu0
        %v1027 = vadd.f32 %v563, %v1026
        %1028 = vdwg.mxu0
        %1029 = vmatprep.subr.bf16.mxu0 %v779
        %1030 = vmatpush1.bf16.msra.mxu0 %v778
        %1031 = vmatprep.subr.bf16.mxu0 %v787
        %1032 = vmatpush1.bf16.msra.mxu0 %v786
        %1033 = vmatprep.subr.bf16.mxu0 %v795
        %1034 = vmatpush1.bf16.msra.mxu0 %v794
        %1035 = vmatprep.subr.bf16.mxu0 %v803
        %1036 = vmatpush1.bf16.msra.mxu0 %v802
        %1037 = vmatprep.subr.bf16.mxu0 %v811
        %1038 = vmatpush1.bf16.msra.mxu0 %v810
        %1039 = vmatprep.subr.bf16.mxu0 %v819
        %1040 = vmatpush1.bf16.msra.mxu0 %v818
        %1041 = vmatprep.subr.bf16.mxu0 %v827
        %1042 = vmatpush1.bf16.msra.mxu0 %v826
        %1043 = vmatprep.subr.bf16.mxu0 %v835
        %1044 = vmatpush1.bf16.msra.mxu0 %v834
        %1045 = vmatprep.subr.bf16.mxu0 0
        %1046 = vmatpush1.bf16.msra.mxu0 0
        %1047 = vmatprep.subr.bf16.mxu0 0
        %1048 = vmatpush1.bf16.msra.mxu0 0
        %1049 = vmatprep.subr.bf16.mxu0 0
        %1050 = vmatpush1.bf16.msra.mxu0 0
        %1051 = vmatprep.subr.bf16.mxu0 0
        %1052 = vmatpush1.bf16.msra.mxu0 0
        %1053 = vmatprep.subr.bf16.mxu0 0
        %1054 = vmatpush1.bf16.msra.mxu0 0
        %1055 = vmatprep.subr.bf16.mxu0 0
        %1056 = vmatpush1.bf16.msra.mxu0 0
        %1057 = vmatprep.subr.bf16.mxu0 0
        %1058 = vmatpush1.bf16.msra.mxu0 0
        %1059 = vmatprep.subr.bf16.mxu0 0
        %1060 = vmatpush1.bf16.msra.mxu0 0
        %1061 = vmatprep.mubr.bf16.mxu0 0
        %1062 = vmatmul.mubr.bf16.gmra.mrb[0].mxu0 %v473
        %v1063 = vpop.f32.mrb[0].mxu0
        %v1064 = vadd.f32 %v567, %v1063
        %v1065 = vpop.f32.mrb[0].mxu0
        %v1066 = vadd.f32 %v571, %v1065
        %v1067 = vpop.f32.mrb[0].mxu0
        %v1068 = vadd.f32 %v567, %v1067
        %v1069 = vpop.f32.mrb[0].mxu0
        %v1070 = vadd.f32 %v571, %v1069
        %1071 = vdwg.mxu0
        %v1072 = vpack.c.bf16 %v939, %v935
        %v1073 = vpack.c.bf16 %v941, %v937
        %v1074 = vpack.c.bf16 %v982, %v978
        %v1075 = vpack.c.bf16 %v984, %v980
        %v1076 = vpack.c.bf16 %v1025, %v1021
        %v1077 = vpack.c.bf16 %v1027, %v1023
        %v1078 = vpack.c.bf16 %v1068, %v1064
        %v1079 = vpack.c.bf16 %v1070, %v1066
        %v1088 = vunpack.c.l.b16 %v1072
        %v1089 = vunpack.c.l.b16 %v1073
        %v1090 = vunpack.c.l.b16 %v1074
        %v1091 = vunpack.c.l.b16 %v1075
        %v1092 = vunpack.c.l.b16 %v1076
        %v1093 = vunpack.c.l.b16 %v1077
        %v1094 = vunpack.c.l.b16 %v1078
        %v1095 = vunpack.c.l.b16 %v1079
        %v1096 = vunpack.c.h.b16 %v1072
        %v1097 = vunpack.c.h.b16 %v1073
        %v1098 = vunpack.c.h.b16 %v1074
        %v1099 = vunpack.c.h.b16 %v1075
        %v1100 = vunpack.c.h.b16 %v1076
        %v1101 = vunpack.c.h.b16 %v1077
        %v1102 = vunpack.c.h.b16 %v1078
        %v1103 = vunpack.c.h.b16 %v1079
        %v1104 = vpack.c.b16 %v1089, %v1088
        %v1105 = vpack.c.b16 %v1091, %v1090
        %v1106 = vpack.c.b16 %v1093, %v1092
        %v1107 = vpack.c.b16 %v1095, %v1094
        %v1108 = vpack.c.b16 %v1097, %v1096
        %v1109 = vpack.c.b16 %v1099, %v1098
        %v1110 = vpack.c.b16 %v1101, %v1100
        %v1111 = vpack.c.b16 %v1103, %v1102
        %1120 = vst [vmem:[%s311] sm:$0xff] %v1104
        %1121 = vst [vmem:[%s311 + $0x8] sm:$0xff] %v1105
        %1122 = vst [vmem:[%s311 + $0x10] sm:$0xff] %v1106
        %1123 = vst [vmem:[%s311 + $0x18] sm:$0xff] %v1107
        %1124 = vst [vmem:[%s311 + $0x20] sm:$0xff] %v1108
        %1125 = vst [vmem:[%s311 + $0x28] sm:$0xff] %v1109
        %1126 = vst [vmem:[%s311 + $0x30] sm:$0xff] %v1110
        %1127 = vst [vmem:[%s311 + $0x38] sm:$0xff] %v1111
        %s1128 = sand.u32 %s198, 1
        %s1129 = scalar_lea.sflag [#allocation4], %s1128
        %s1130 = sand.u32 %s198, 1
        %s1131 = smul.addr %s1130, 64
        %s1132 = scalar_lea.vmem [#allocation5], %s1131
        // Predicated region
        $region53: #{tpu_custom_call.1} parent=47 // pred_check
          %p1133 = pneg %p208
        $region54: #{tpu_custom_call.1} parent=47 // pred_check_branch
          %1135 = sbr.rel (%p1133) target = $region56
        $region55: #{tpu_custom_call.1} parent=47 // pred_region
          %s1136 = smul.u32 2, %s27
          %s1138 = ssub.s32 1024, 1024
          %1139 = vsyncadd %s1129, %s1138
          %s1140 = smul.addr %s1136, 8
          %s1141 = smul.addr %s26, 32
          %s1142 = sadd.s32 %s1140, %s1141
          %s1143 = smul.addr %s1142, 64
          %s1144 = scalar_lea.hbm %s7, %s1143
          %s1145 = sshll.u32 %s1132, 4
          %s1146 = int_to_ptr.vmem [resolvable:$true] %s1145
          %1151 = dma.vmem_to_hbm [thread:$0]  %s1146, 1024, %s1144, %s1129, 512, 512, 32
        $region56: #{tpu_custom_call.1} parent=47 // pred_fallthru
          _
      $region48: #{tpu_custom_call.1} parent=5 // pred_fallthru
        _
      %p1152 = scmp.le.s32.totalorder 2, %s17
      // Predicated region
      $region57: #{tpu_custom_call.1} parent=5 // pred_check
        %p1153 = pneg %p1152
      $region58: #{tpu_custom_call.1} parent=5 // pred_check_branch
        %1155 = sbr.rel (%p1153) target = $region60
      $region59: #{tpu_custom_call.1} parent=5 // pred_region
        %s1156 = ssub.s32 %s17, 2
        // Predicated region
        $region61: #{tpu_custom_call.1} parent=59 // pred_check
          %p1157 = pneg %p214
        $region62: #{tpu_custom_call.1} parent=59 // pred_check_branch
          %1159 = sbr.rel (%p1157) target = $region64
        $region63: #{tpu_custom_call.1} parent=59 // pred_region
          %s1160 = sand.u32 %s199, 1
          %s1161 = scalar_lea.sflag [#allocation4], %s1160
          %s1162 = sand.u32 %s199, 1
          %s1163 = smul.addr %s1162, 64
          %s1164 = scalar_lea.vmem [#allocation5], %s1163
          %1165 = dma.done %s1161, 1024
        $region64: #{tpu_custom_call.1} parent=59 // pred_fallthru
          _
      $region60: #{tpu_custom_call.1} parent=5 // pred_fallthru
        _
    $region6: #{tpu_custom_call.1} parent=1 // loop_footer
      %s21 = sadd.s32 1, %s17
    $region7: #{tpu_custom_call.1} parent=1 // loop_footer_branch
      %16 = sbr.rel target = $region3
    $region8: #{tpu_custom_call.1} parent=1 // loop_exit
      _
    %1166 = vsyncpa [#allocation3], 1
    %s1167 = scalar_lea.sflag [#allocation3], 1
    %1168 = vsyncpa %s1167, 1
    %1169 = vsyncpa [#allocation4], 1
    %s1170 = scalar_lea.sflag [#allocation4], 1
    %1171 = vsyncpa %s1170, 1

</llo_original>
